<compile_context>
chip_gen: v7x
topology: tpu7x:2x2x1
jax: 0.10.0
libtpu: 0.0.40
codegen_flags: <defaults>
</compile_context>

<pallas_src>
import functools

import jax
import jax.numpy as jnp
from jax.experimental import pallas as pl
from jax.experimental.pallas import tpu as pltpu


def _lsce_kernel(x_ref, t_ref, out_ref, *, smoothing, B, TB):
    # x_ref:   (TB, C) logits tile in VMEM (native dtype, bf16 or f32)
    # t_ref:   (TB, 1) int32 targets tile in VMEM
    # out_ref: (8, 128) f32 per-tile partial-sum block in VMEM
    pid = pl.program_id(0)
    confidence = 1.0 - smoothing

    x_in = x_ref[...]                                          # (TB, C) native
    C = x_in.shape[-1]
    tgt = t_ref[...]                                           # (TB, 1) int32

    # Row max in the input dtype (exact in bf16; packed 2x VPU on v6e/v7x).
    m = jnp.max(x_in, axis=-1, keepdims=True).astype(jnp.float32)   # (TB, 1)

    x = x_in.astype(jnp.float32)                               # (TB, C) f32

    # Reductions over raw x so `shifted` below has exactly one consumer (exp).
    sum_x = jnp.sum(x, axis=-1, keepdims=True)                 # (TB, 1)
    col = jax.lax.broadcasted_iota(jnp.int32, x.shape, 1)      # (TB, C)
    x_tgt = jnp.sum(jnp.where(col == tgt, x, 0.0),
                    axis=-1, keepdims=True)                    # (TB, 1)

    shifted = x - m                                            # single use -> exp
    lse = jnp.log(jnp.sum(jnp.exp(shifted), axis=-1, keepdims=True))  # (TB, 1)

    # loss_row = (m + lse) - confidence*x[tgt] - (smoothing/C)*sum(x)
    loss = (m + lse) - confidence * x_tgt - (smoothing / C) * sum_x   # (TB, 1)

    # Mask rows past the true batch size (partially filled last tile; also
    # suppresses NaN/Inf from uninitialized padding rows, since where() selects).
    row = pid * TB + jax.lax.broadcasted_iota(jnp.int32, (TB, 1), 0)
    loss = jnp.where(row < B, loss, 0.0)

    partial = jnp.sum(loss)                                    # scalar per tile
    out_ref[...] = jnp.broadcast_to(partial, out_ref.shape).astype(out_ref.dtype)


def _vmem_capacity_bytes():
    try:
        return int(pltpu.get_tpu_info().vmem_capacity_bytes)
    except Exception:
        return 64 * 1024 * 1024  # conservative (v7x-sized) fallback


def _choose_tb(B, C, itemsize, vmem_bytes):
    """Row-tile size.

    Raw logits block ~6 MiB on 128 MiB-VMEM parts (v5e/v6e, DMA-bound -> big
    tiles approach HBM roofline), ~2 MiB on 64 MiB parts (v7x, leaves room for
    double-buffered input + f32 intermediates).  Multiple of 8 rows.  Also
    capped so there are >= ~8 tiles when B allows it (v7x dual-TC + pipeline).
    """
    big_vmem = vmem_bytes >= 100 * 1024 * 1024
    target_bytes = (6 if big_vmem else 2) * 1024 * 1024
    tb = max(8, (target_bytes // max(1, C * itemsize)) // 8 * 8)
    tb = min(tb, 1024)
    # Keep >= ~8 tiles so both v7x TensorCores get work and DMA stays hidden.
    cap = (B // 8) // 8 * 8
    if cap >= 8:
        tb = min(tb, cap)
    if B <= tb:
        return B  # single tile covering the whole batch (block == array dims)
    return tb


def label_smoothing_cross_entropy(x, target, smoothing=0.1, block_rows=None):
    """x: (B, C) float logits, target: (B,) int labels -> scalar f32 loss.

    Note: out-of-range labels (>= C) silently yield nll = logsumexp instead of
    erroring like PyTorch.
    """
    B, C = x.shape
    itemsize = jnp.dtype(x.dtype).itemsize
    vmem_cap = _vmem_capacity_bytes()

    if block_rows is None:
        TB = _choose_tb(B, C, itemsize, vmem_cap)
    else:
        # Validate: a block that is not the full batch must have rows % 8 == 0.
        TB = min(int(block_rows), B)
        if TB != B and TB % 8 != 0:
            TB = -(-TB // 8) * 8  # round up to a multiple of 8
            if TB >= B:
                TB = B

    num_tiles = pl.cdiv(B, TB)
    t2d = target.astype(jnp.int32).reshape(B, 1)

    kernel = functools.partial(
        _lsce_kernel, smoothing=float(smoothing), B=B, TB=TB)

    vmem_limit = (96 if vmem_cap >= 100 * 1024 * 1024 else 48) * 1024 * 1024

    partials = pl.pallas_call(
        kernel,
        out_shape=jax.ShapeDtypeStruct((num_tiles * 8, 128), jnp.float32),
        grid=(num_tiles,),
        in_specs=[
            pl.BlockSpec((TB, C), lambda i: (i, 0)),   # logits tile
            pl.BlockSpec((TB, 1), lambda i: (i, 0)),   # targets tile
        ],
        out_specs=pl.BlockSpec((8, 128), lambda i: (i, 0)),  # per-tile partial
        compiler_params=pltpu.CompilerParams(
            dimension_semantics=("parallel",),          # shard tiles across TCs
            vmem_limit_bytes=vmem_limit,
        ),
        cost_estimate=pl.CostEstimate(
            flops=6 * B * C,
            transcendentals=B * C + B,                  # exp per elem + log per row
            bytes_accessed=B * C * itemsize + B * 4 + num_tiles * 8 * 128 * 4,
        ),
    )(x, t2d)

    # Every lane of a tile's (8,128) block holds that tile's partial sum; pull
    # one value per tile without a strided gather, then finish the batch mean.
    per_tile = partials.reshape(num_tiles, 8, 128)[:, 0, 0]
    return jnp.sum(per_tile) / B


def _reference(x, target, smoothing):
    logprobs = jax.nn.log_softmax(x.astype(jnp.float32), axis=-1)
    nll = -jnp.take_along_axis(logprobs, target[:, None], axis=-1)[:, 0]
    smooth = -jnp.mean(logprobs, axis=-1)
    return jnp.mean((1.0 - smoothing) * nll + smoothing * smooth)


if __name__ == "__main__":
    key = jax.random.PRNGKey(0)
    kx1, kt1, kx2, kt2, kx3, kt3 = jax.random.split(key, 6)

    # Case 1: small single-tile case (C < 128 uses the full-array-dim block).
    B1, C1 = 8, 32
    x1 = jax.random.normal(kx1, (B1, C1), dtype=jnp.float32)
    t1 = jax.random.randint(kt1, (B1,), 0, C1, dtype=jnp.int32)
    loss1 = jax.block_until_ready(label_smoothing_cross_entropy(x1, t1, 0.1))
    ref1 = _reference(x1, t1, 0.1)
    assert jnp.allclose(loss1, ref1, atol=1e-5, rtol=1e-5), (loss1, ref1)

    # Case 2: multi-tile grid with a partially filled last tile (masking path).
    B2, C2 = 20, 128
    x2 = jax.random.normal(kx2, (B2, C2), dtype=jnp.float32)
    t2 = jax.random.randint(kt2, (B2,), 0, C2, dtype=jnp.int32)
    loss2 = jax.block_until_ready(
        label_smoothing_cross_entropy(x2, t2, 0.1, block_rows=8))
    ref2 = _reference(x2, t2, 0.1)
    assert jnp.allclose(loss2, ref2, atol=1e-5, rtol=1e-5), (loss2, ref2)

    # Case 3: bf16 logits stay bf16 in HBM; max in bf16, sums/exp in f32.
    B3, C3 = 16, 256
    x3 = jax.random.normal(kx3, (B3, C3), dtype=jnp.float32).astype(jnp.bfloat16)
    t3 = jax.random.randint(kt3, (B3,), 0, C3, dtype=jnp.int32)
    loss3 = jax.block_until_ready(
        label_smoothing_cross_entropy(x3, t3, 0.1, block_rows=8))
    ref3 = _reference(x3, t3, 0.1)
    assert jnp.allclose(loss3, ref3, atol=1e-4, rtol=1e-4), (loss3, ref3)

    print("KERNEL_OK")
</pallas_src>

<mosaic_0001>
module attributes {stable_mosaic.version = 11 : i64} {
  func.func @_lsce_kernel(%arg0: i32, %arg1: memref<8x32xf32, #tpu.memory_space<vmem>>, %arg2: memref<8x1xi32, #tpu.memory_space<vmem>>, %arg3: memref<8x128xf32, #tpu.memory_space<vmem>>) attributes {dimension_semantics = [#tpu.dimension_semantics<parallel>], iteration_bounds = array<i64: 1>, scalar_prefetch = 0 : i64, scratch_operands = 0 : i64, tpu.core_type = #tpu.core_type<tc>, window_params = [{transform_indices = @transform_0, window_bounds = array<i64: 8, 32>}, {transform_indices = @transform_1, window_bounds = array<i64: 8, 1>}, {transform_indices = @transform_2, window_bounds = array<i64: 8, 128>}]} {
    %c0 = arith.constant 0 : index
    %c0_0 = arith.constant 0 : index
    %0 = vector.load %arg1[%c0, %c0_0] : memref<8x32xf32, #tpu.memory_space<vmem>>, vector<8x32xf32>
    %c0_1 = arith.constant 0 : index
    %c0_2 = arith.constant 0 : index
    %1 = vector.load %arg2[%c0_1, %c0_2] : memref<8x1xi32, #tpu.memory_space<vmem>>, vector<8x1xi32>
    %cst = arith.constant dense<0xFF800000> : vector<8xf32>
    %2 = vector.multi_reduction <maximumf>, %0, %cst [1] : vector<8x32xf32> to vector<8xf32>
    %3 = vector.shape_cast %2 : vector<8xf32> to vector<8x1xf32>
    %cst_3 = arith.constant dense<0.000000e+00> : vector<8xf32>
    %4 = vector.multi_reduction <add>, %0, %cst_3 [1] : vector<8x32xf32> to vector<8xf32>
    %5 = vector.shape_cast %4 : vector<8xf32> to vector<8x1xf32>
    %6 = tpu.iota {dimensions = array<i32: 1>} : vector<8x32xi32>
    %7 = vector.broadcast %1 : vector<8x1xi32> to vector<8x32xi32>
    %8 = arith.cmpi eq, %6, %7 : vector<8x32xi32>
    %cst_4 = arith.constant 0.000000e+00 : f32
    %9 = vector.broadcast %cst_4 : f32 to vector<8x32xf32>
    %10 = arith.select %8, %0, %9 : vector<8x32xi1>, vector<8x32xf32>
    %cst_5 = arith.constant dense<0.000000e+00> : vector<8xf32>
    %11 = vector.multi_reduction <add>, %10, %cst_5 [1] : vector<8x32xf32> to vector<8xf32>
    %12 = vector.shape_cast %11 : vector<8xf32> to vector<8x1xf32>
    %13 = vector.broadcast %3 : vector<8x1xf32> to vector<8x32xf32>
    %14 = arith.subf %0, %13 : vector<8x32xf32>
    %15 = math.exp %14 : vector<8x32xf32>
    %cst_6 = arith.constant dense<0.000000e+00> : vector<8xf32>
    %16 = vector.multi_reduction <add>, %15, %cst_6 [1] : vector<8x32xf32> to vector<8xf32>
    %17 = vector.shape_cast %16 : vector<8xf32> to vector<8x1xf32>
    %18 = math.log %17 : vector<8x1xf32>
    %19 = arith.addf %3, %18 : vector<8x1xf32>
    %cst_7 = arith.constant 0.899999976 : f32
    %20 = vector.broadcast %cst_7 : f32 to vector<8x1xf32>
    %21 = arith.mulf %20, %12 : vector<8x1xf32>
    %22 = arith.subf %19, %21 : vector<8x1xf32>
    %cst_8 = arith.constant 3.125000e-03 : f32
    %23 = vector.broadcast %cst_8 : f32 to vector<8x1xf32>
    %24 = arith.mulf %23, %5 : vector<8x1xf32>
    %25 = arith.subf %22, %24 : vector<8x1xf32>
    %c8_i32 = arith.constant 8 : i32
    %26 = arith.muli %arg0, %c8_i32 : i32
    %27 = tpu.iota {dimensions = array<i32: 0>} : vector<8x1xi32>
    %28 = vector.broadcast %26 : i32 to vector<8x1xi32>
    %29 = arith.addi %28, %27 : vector<8x1xi32>
    %c8_i32_9 = arith.constant 8 : i32
    %30 = vector.broadcast %c8_i32_9 : i32 to vector<8x1xi32>
    %31 = arith.cmpi slt, %29, %30 : vector<8x1xi32>
    %cst_10 = arith.constant 0.000000e+00 : f32
    %32 = vector.broadcast %cst_10 : f32 to vector<8x1xf32>
    %33 = arith.select %31, %25, %32 : vector<8x1xi1>, vector<8x1xf32>
    %34 = vector.shape_cast %33 : vector<8x1xf32> to vector<1x8x1xf32>
    %cst_11 = arith.constant dense<0.000000e+00> : vector<1xf32>
    %35 = vector.multi_reduction <add>, %34, %cst_11 [1, 2] : vector<1x8x1xf32> to vector<1xf32>
    %36 = vector.shape_cast %35 : vector<1xf32> to vector<1x1x1xf32>
    %37 = vector.extract %36[0, 0, 0] : f32 from vector<1x1x1xf32>
    %38 = vector.broadcast %37 : f32 to vector<8x128xf32>
    %c0_12 = arith.constant 0 : index
    %c0_13 = arith.constant 0 : index
    %39 = vector.load %arg3[%c0_12, %c0_13] : memref<8x128xf32, #tpu.memory_space<vmem>>, vector<8x128xf32>
    tpu.vector_store %arg3[%c0_12, %c0_13], %38 {strides = array<i32>} : memref<8x128xf32, #tpu.memory_space<vmem>>, vector<8x128xf32>,
    return
  }
  func.func @transform_0(%arg0: i32) -> (i32, i32) {
    %c0_i32 = arith.constant 0 : i32
    %c0_i32_0 = arith.constant 0 : i32
    return %arg0, %c0_i32 : i32, i32
  }
  func.func @transform_1(%arg0: i32) -> (i32, i32) {
    %c0_i32 = arith.constant 0 : i32
    %c0_i32_0 = arith.constant 0 : i32
    return %arg0, %c0_i32 : i32, i32
  }
  func.func @transform_2(%arg0: i32) -> (i32, i32) {
    %c0_i32 = arith.constant 0 : i32
    %c0_i32_0 = arith.constant 0 : i32
    return %arg0, %c0_i32 : i32, i32
  }
}

</mosaic_0001>

<llo_original>
// kernel: tpu_custom_call.1
$region0: #{tpu_custom_call.1}
  #allocation0 [shape = 'u32[]', space=smem, size = 0x4, offset = 0x4, fixed_abs, tag = 'smem constant byte address 0x4 - core index']
  #allocation1 [shape = 'u32[144,128]{1,0:T(1,128)}', space=vmem, size = 0x12000, scoped, tag = 'internal scratch']
  %s0 = inlined_call_operand.vmem [shape: f32[8,32], index: 0, kind: input, shape index: {}]
  %s1 = inlined_call_operand.vmem [shape: s32[8,1], index: 1, kind: input, shape index: {}]
  %s2 = inlined_call_operand.hbm [shape: f32[8,128], index: 2, kind: output, shape index: {}]
  %s3 = sld [smem:[#allocation0]]
  $region18: #{tpu_custom_call.1} parent=0
    _
  %s5 = ssub.s32 1, %s3
  %s6 = scalar_select 0, %s5, %s3
  $region1: #{tpu_custom_call.1} parent=0
    #allocation2 [shape = 'u8[4096]{0}', space=vmem, size = 0x1000, scoped, tag = 'output window, operand 0, single buffered']
    #allocation3 [shape = 's32[1]{0}', space=sflag, size = 0x4, scoped, tag = 'scoped memory for tpu_custom_call.1']
    %7 = vsyncpa [#allocation3], 0
    // Predicated region
    $region2: #{tpu_custom_call.1} parent=1 // pred_check
      _
    $region3: #{tpu_custom_call.1} parent=1 // pred_check_branch
      %9 = sbr.rel (0) target = $region5
    $region4: #{tpu_custom_call.1} parent=1 // pred_region
      _
    $region5: #{tpu_custom_call.1} parent=1 // pred_fallthru
      _
    // Predicated region
    $region6: #{tpu_custom_call.1} parent=1 // pred_check
      _
    $region7: #{tpu_custom_call.1} parent=1 // pred_check_branch
      %11 = sbr.rel (0) target = $region9
    $region8: #{tpu_custom_call.1} parent=1 // pred_region
      _
    $region9: #{tpu_custom_call.1} parent=1 // pred_fallthru
      _
    %v12 = vld [vmem:[%s0] sm:$0xff]
    %v13 = vld [vmem:[%s1] sm:$0xff]
    %vm14 = vcmask 261120
    %v15 = vsel %vm14, %v12, -inf
    %16 = vmax.xlane.f32.xlu0 %v15
    %v17 = vpop.xlane.xlu0 %16
    %v18 = vsel %vm14, %v12, 0.0
    %19 = vadd.xlane.f32.xlu0 %v18
    %v20 = vpop.xlane.xlu0 %19
    %v21 = vlaneseq
    %v22 = vand.u32 %v21, 127
    %23 = vset.pattern.permute.xlu0 0
    %24 = vperm.xlu0 %23, %v13
    %v25 = vpop.permute.xlu0 %24
    %vm26 = vcmp.eq.s32.totalorder %v22, %v25
    %v27 = vsel %vm26, %v12, 0.0
    %v28 = vsel %vm14, %v27, 0.0
    %29 = vadd.xlane.f32.xlu0 %v28
    %v30 = vpop.xlane.xlu0 %29
    %v31 = vsub.f32 %v12, %v17
    %v32 = vmul.f32 %v31, 1.442695
    %v33 = vpow.pop %v32
    %v34 = vsel %vm14, %v33, 0.0
    %35 = vadd.xlane.f32.xlu0 %v34
    %v36 = vpop.xlane.xlu0 %35
    %v37 = vlog2.pop %v36
    %v38 = vmul.f32 %v37, 0.6931472
    %v39 = vadd.f32 %v17, %v38
    %v40 = vmul.f32 %v30, 0.9
    %v41 = vsub.f32 %v39, %v40
    %v42 = vmul.f32 %v20, 0.003125
    %v43 = vsub.f32 %v41, %v42
    %s44 = smul.u32 0, 8
    %v45 = vlaneseq
    %v46 = vshrl.u32 %v45, 7
    %v47 = vstv %s44
    %v48 = vadd.s32 %v47, %v46
    %vm49 = vcmp.lt.s32.totalorder %v48, 8
    %v50 = vsel %vm49, %v43, 0.0
    %vm51 = vcmask 7168
    %v52 = vsel %vm51, %v50, 0.0
    %53 = vadd.xlane.f32.xlu0 %v52
    %v54 = vpop.xlane.xlu0 %53
    %v55 = vrot.slane %v54, 4
    %v56 = vadd.f32 %v54, %v55
    %v57 = vrot.slane %v56, 2
    %v58 = vadd.f32 %v56, %v57
    %v59 = vrot.slane %v58, 1
    %v60 = vadd.f32 %v58, %v59
    %s61 = vtos %v60
    %v62 = vstv %s61
    %63 = vst [vmem:[#allocation2] sm:$0xff] %v62
    // Predicated region
    $region10: #{tpu_custom_call.1} parent=1 // pred_check
      _
    $region11: #{tpu_custom_call.1} parent=1 // pred_check_branch
      %65 = sbr.rel (0) target = $region13
    $region12: #{tpu_custom_call.1} parent=1 // pred_region
      %s67 = ssub.s32 128, 128
      %68 = vsyncadd [#allocation3], %s67
      %s70 = sshll.u32 [#allocation2], 4
      %s71 = int_to_ptr.vmem [resolvable:$true] %s70
      %73 = dma.vmem_to_hbm [thread:$0]  %s71, 128, %s2, [#allocation3]
    $region13: #{tpu_custom_call.1} parent=1 // pred_fallthru
      _
    // Predicated region
    $region14: #{tpu_custom_call.1} parent=1 // pred_check
      _
    $region15: #{tpu_custom_call.1} parent=1 // pred_check_branch
      %75 = sbr.rel (0) target = $region17
    $region16: #{tpu_custom_call.1} parent=1 // pred_region
      %76 = dma.done [#allocation3], 128
    $region17: #{tpu_custom_call.1} parent=1 // pred_fallthru
      _
    %77 = vsyncpa [#allocation3], 1

</llo_original>
